<compile_context>
chip_gen: v6e
topology: v6e:2x2x1
jax: 0.10.0
libtpu: 0.0.40
codegen_flags: <defaults>
</compile_context>

<pallas_src>
import functools

import jax
import jax.numpy as jnp
from jax.experimental import pallas as pl
from jax.experimental.pallas import tpu as pltpu


def _round_up(x, m):
    return ((x + m - 1) // m) * m


def _vmem_capacity_bytes():
    """Per-TensorCore VMEM capacity; conservative fallback if query fails."""
    try:
        info = pltpu.get_tpu_info()
        cap = int(getattr(info, "vmem_capacity_bytes", 0))
        if cap > 0:
            return cap
    except Exception:
        pass
    return 64 * 1024 * 1024  # v7x-sized fallback (safe on every generation)


# ----------------------------------------------------------------------------
# Kernel bodies.  Grid = (batch tiles, hidden tiles); hidden is the reduction
# axis of the second matmul, so recon is accumulated across it.
# ----------------------------------------------------------------------------
def _ae_kernel_acc_out(x_ref, w_enc_ref, w_dec_ref, b_enc_ref, b_dec_ref,
                       out_ref, xc_ref):
    """f32 output: accumulate the reconstruction directly into out_ref."""
    h = pl.program_id(1)

    @pl.when(h == 0)
    def _init():
        # Hoisted once per batch tile: load x, center by b_dec, cast to the
        # matmul input dtype.
        xc = x_ref[...].astype(jnp.float32) - b_dec_ref[...].astype(jnp.float32)
        xc_ref[...] = xc.astype(xc_ref.dtype)
        out_ref[...] = jnp.zeros_like(out_ref)

    # acts_h = relu(x_cent @ W_enc[:, h_tile] + b_enc[h_tile])   (MXU, f32 acc)
    acts = jnp.dot(xc_ref[...], w_enc_ref[...],
                   preferred_element_type=jnp.float32)
    acts = jnp.maximum(acts + b_enc_ref[...].astype(jnp.float32), 0.0)

    # recon += acts_h @ W_dec[h_tile, :]                         (MXU, f32 acc)
    out_ref[...] += jnp.dot(acts.astype(w_dec_ref.dtype), w_dec_ref[...],
                            preferred_element_type=jnp.float32)

    @pl.when(h == pl.num_programs(1) - 1)
    def _finalize():
        out_ref[...] += b_dec_ref[...].astype(jnp.float32)


def _ae_kernel_scratch_acc(x_ref, w_enc_ref, w_dec_ref, b_enc_ref, b_dec_ref,
                           out_ref, xc_ref, acc_ref):
    """Non-f32 output: accumulate in an f32 VMEM scratch, cast on writeback."""
    h = pl.program_id(1)

    @pl.when(h == 0)
    def _init():
        xc = x_ref[...].astype(jnp.float32) - b_dec_ref[...].astype(jnp.float32)
        xc_ref[...] = xc.astype(xc_ref.dtype)
        acc_ref[...] = jnp.zeros_like(acc_ref)

    acts = jnp.dot(xc_ref[...], w_enc_ref[...],
                   preferred_element_type=jnp.float32)
    acts = jnp.maximum(acts + b_enc_ref[...].astype(jnp.float32), 0.0)
    acc_ref[...] += jnp.dot(acts.astype(w_dec_ref.dtype), w_dec_ref[...],
                            preferred_element_type=jnp.float32)

    @pl.when(h == pl.num_programs(1) - 1)
    def _finalize():
        out_ref[...] = (acc_ref[...]
                        + b_dec_ref[...].astype(jnp.float32)).astype(out_ref.dtype)


# ----------------------------------------------------------------------------
# Wrapper
# ----------------------------------------------------------------------------
@functools.partial(jax.jit, static_argnames=("block_b", "block_h"))
def autoencoder_forward(x, w_enc, w_dec, b_enc, b_dec, *,
                        block_b=None, block_h=None):
    batch, d_mlp = x.shape
    d_hidden = w_enc.shape[1]
    out_dtype = x.dtype
    w_dtype = w_enc.dtype

    wbytes = jnp.dtype(w_dtype).itemsize
    xbytes = jnp.dtype(x.dtype).itemsize
    obytes = jnp.dtype(out_dtype).itemsize
    bbytes = jnp.dtype(b_enc.dtype).itemsize

    # ---- pad hidden axis to a multiple of 128 (zero-padded hidden units
    #      produce relu(0)=0 and contribute nothing to the reconstruction). ---
    d_hidden_p = _round_up(d_hidden, 128)
    if d_hidden_p != d_hidden:
        pad = d_hidden_p - d_hidden
        w_enc = jnp.pad(w_enc, ((0, 0), (0, pad)))
        w_dec = jnp.pad(w_dec, ((0, pad), (0, 0)))
        b_enc = jnp.pad(b_enc, (0, pad))

    # ---- batch tile: never force-split (grid is a serial loop on 1-TC chips);
    #      one full tile when it fits, else 256-row tiles for the MXU. --------
    max_bb = 256
    if block_b is None:
        block_b = batch if batch <= max_bb else max_bb
    block_b = min(block_b, batch)
    if block_b < batch:
        block_b = max(8, (block_b // 8) * 8)   # (8,128) sublane constraint
    n_b = pl.cdiv(batch, block_b)

    # ---- generation-aware VMEM budget ---------------------------------------
    vmem_cap = _vmem_capacity_bytes()          # 128 MiB v5e/v6e, 64 MiB v7x
    budget = int(vmem_cap * 0.75)              # headroom for Mosaic scratch

    acc_in_out = (out_dtype == jnp.float32)

    def vmem_needed(bh):
        n_h = d_hidden_p // bh
        wbuf = 1 if n_h == 1 else 2            # constant-index blocks: 1 buffer
        xbuf = 1 if n_b == 1 else 2
        need = (
            d_mlp * bh * wbytes * wbuf         # W_enc tile(s)
            + bh * d_mlp * wbytes * wbuf       # W_dec tile(s)
            + block_b * d_mlp * xbytes * xbuf  # x tile
            + block_b * d_mlp * obytes * 2     # out tile (double-buffered)
            + bh * bbytes * wbuf               # b_enc tile(s)
            + d_mlp * bbytes                   # b_dec row
            + block_b * d_mlp * wbytes         # x_cent scratch
            + 2 * block_b * bh * 4             # acts f32 + relu/cast temp
        )
        if not acc_in_out:
            need += block_b * d_mlp * 4        # f32 accumulator scratch
        return need

    # ---- hidden tile: largest multiple-of-128 divisor of d_hidden_p fitting -
    candidates = [c for c in range(128, d_hidden_p + 1, 128)
                  if d_hidden_p % c == 0]
    if block_h is not None:
        bh_req = min(block_h, d_hidden_p)
        block_h = bh_req if bh_req in candidates else None
    if block_h is None:
        block_h = candidates[0]
        for c in candidates:
            if vmem_needed(c) <= budget:
                block_h = max(block_h, c)
    n_h = d_hidden_p // block_h

    vmem_limit = int(min(max(int(vmem_needed(block_h) * 1.5), 32 * 1024 * 1024),
                         int(vmem_cap * 0.9)))

    b_enc2 = b_enc.reshape(1, d_hidden_p)
    b_dec2 = b_dec.reshape(1, d_mlp)

    # Constant-index blocks -> single buffer (halves their VMEM footprint).
    w_const = (n_h == 1)
    x_const = (n_b == 1)

    def _spec(shape, index_map, constant):
        if constant:
            return pl.BlockSpec(shape, index_map, pipeline_mode=pl.Buffered(1))
        return pl.BlockSpec(shape, index_map)

    in_specs = [
        _spec((block_b, d_mlp), lambda i, h: (i, 0), x_const),      # x
        _spec((d_mlp, block_h), lambda i, h: (0, h), w_const),      # W_enc
        _spec((block_h, d_mlp), lambda i, h: (h, 0), w_const),      # W_dec
        _spec((1, block_h), lambda i, h: (0, h), w_const),          # b_enc
        _spec((1, d_mlp), lambda i, h: (0, 0), True),               # b_dec
    ]
    out_spec = pl.BlockSpec((block_b, d_mlp), lambda i, h: (i, 0))

    scratch_shapes = [pltpu.VMEM((block_b, d_mlp), w_dtype)]        # x_cent
    kernel = _ae_kernel_acc_out
    if not acc_in_out:
        scratch_shapes.append(pltpu.VMEM((block_b, d_mlp), jnp.float32))
        kernel = _ae_kernel_scratch_acc

    # ---- cost estimate: two GEMMs over the whole problem --------------------
    flops = 2 * 2 * batch * d_mlp * d_hidden_p
    bytes_accessed = int(batch * d_mlp * (xbytes + obytes)
                         + 2 * d_mlp * d_hidden_p * wbytes
                         + (d_hidden_p + d_mlp) * bbytes)
    cost = pl.CostEstimate(flops=flops, transcendentals=0,
                           bytes_accessed=bytes_accessed)

    # NOTE(perf): on v7x a further option is splitting the *hidden* axis across
    # the two TensorCores (partial recon per core, summed afterwards) instead
    # of the batch axis; not done here to keep a single-kernel design.
    return pl.pallas_call(
        kernel,
        out_shape=jax.ShapeDtypeStruct((batch, d_mlp), out_dtype),
        grid_spec=pltpu.PrefetchScalarGridSpec(
            num_scalar_prefetch=0,
            grid=(n_b, n_h),
            in_specs=in_specs,
            out_specs=out_spec,
            scratch_shapes=scratch_shapes,
        ),
        compiler_params=pltpu.CompilerParams(
            dimension_semantics=("parallel", "arbitrary"),
            vmem_limit_bytes=vmem_limit,
        ),
        cost_estimate=cost,
    )(x, w_enc, w_dec, b_enc2, b_dec2)


# ----------------------------------------------------------------------------
# Reference + init (mirrors the PyTorch module's shapes / forward semantics)
# ----------------------------------------------------------------------------
def init_params(key, d_mlp, d_hidden, dtype=jnp.float32):
    k_enc, k_dec = jax.random.split(key)
    bound_enc = jnp.sqrt(6.0 / d_hidden)
    bound_dec = jnp.sqrt(6.0 / d_mlp)
    w_enc = jax.random.uniform(k_enc, (d_mlp, d_hidden), dtype,
                               minval=-bound_enc, maxval=bound_enc)
    w_dec = jax.random.uniform(k_dec, (d_hidden, d_mlp), dtype,
                               minval=-bound_dec, maxval=bound_dec)
    w_dec = w_dec / jnp.linalg.norm(w_dec, axis=-1, keepdims=True)
    b_enc = jnp.zeros((d_hidden,), dtype)
    b_dec = jnp.zeros((d_mlp,), dtype)
    return w_enc, w_dec, b_enc, b_dec


def reference_forward(x, w_enc, w_dec, b_enc, b_dec):
    hi = jax.lax.Precision.HIGHEST
    x_cent = x - b_dec
    acts = jax.nn.relu(jnp.dot(x_cent, w_enc, precision=hi) + b_enc)
    return jnp.dot(acts, w_dec, precision=hi) + b_dec


if __name__ == "__main__":
    # cfg: d_mlp=128, dict_mult=4 -> d_hidden=512 (l1_coeff unused in forward)
    d_mlp = 128
    dict_mult = 4
    d_hidden = d_mlp * dict_mult
    batch = 64

    key = jax.random.PRNGKey(0)
    k_params, k_be, k_bd, k_x = jax.random.split(key, 4)
    w_enc, w_dec, b_enc, b_dec = init_params(k_params, d_mlp, d_hidden)
    # Non-zero biases so the bias/broadcast paths are actually exercised.
    b_enc = 0.1 * jax.random.normal(k_be, (d_hidden,), jnp.float32)
    b_dec = 0.1 * jax.random.normal(k_bd, (d_mlp,), jnp.float32)
    x = jax.random.normal(k_x, (batch, d_mlp), jnp.float32)

    ref = reference_forward(x, w_enc, w_dec, b_enc, b_dec)

    # 1) f32, auto tiling: weights fit in VMEM -> grid collapses to (1, 1),
    #    single-buffered resident weights, recon accumulated in out_ref.
    out = jax.block_until_ready(autoencoder_forward(x, w_enc, w_dec, b_enc, b_dec))
    assert out.shape == (batch, d_mlp)
    assert jnp.allclose(out, ref, atol=2e-3, rtol=2e-3), "f32 (1,1)-grid mismatch"

    # 2) f32, forced tiling: grid (2, 4) exercises the hidden-axis accumulation
    #    and the hoisted x_cent scratch reuse across hidden tiles.
    out_t = jax.block_until_ready(
        autoencoder_forward(x, w_enc, w_dec, b_enc, b_dec, block_b=32, block_h=128))
    assert jnp.allclose(out_t, ref, atol=2e-3, rtol=2e-3), "f32 tiled mismatch"

    # 3) bf16 weights passed in bf16 up front (no per-call cast inside the
    #    wrapper), f32 x / f32 accumulation / f32 output.
    out_bf16w = jax.block_until_ready(
        autoencoder_forward(x, w_enc.astype(jnp.bfloat16),
                            w_dec.astype(jnp.bfloat16), b_enc, b_dec))
    assert jnp.allclose(out_bf16w, ref, atol=1e-1, rtol=1e-1), "bf16-weight mismatch"

    # 4) bf16 activations + bf16 weights -> bf16 output path (scratch-accumulator
    #    kernel body, f32 accumulation).
    out_bf16 = jax.block_until_ready(
        autoencoder_forward(x.astype(jnp.bfloat16), w_enc.astype(jnp.bfloat16),
                            w_dec.astype(jnp.bfloat16), b_enc, b_dec))
    assert out_bf16.dtype == jnp.bfloat16
    assert jnp.allclose(out_bf16.astype(jnp.float32), ref,
                        atol=1.5e-1, rtol=1.5e-1), "bf16 mismatch"

    print("KERNEL_OK")
</pallas_src>

<mosaic_0001>
module attributes {stable_mosaic.version = 11 : i64} {
  func.func @_ae_kernel_acc_out(%arg0: i32, %arg1: i32, %arg2: memref<64x128xf32, #tpu.memory_space<vmem>>, %arg3: memref<128x512xf32, #tpu.memory_space<vmem>>, %arg4: memref<512x128xf32, #tpu.memory_space<vmem>>, %arg5: memref<1x512xf32, #tpu.memory_space<vmem>>, %arg6: memref<1x128xf32, #tpu.memory_space<vmem>>, %arg7: memref<64x128xf32, #tpu.memory_space<vmem>>, %arg8: memref<64x128xf32, #tpu.memory_space<vmem>>) attributes {dimension_semantics = [#tpu.dimension_semantics<parallel>, #tpu.dimension_semantics<arbitrary>], iteration_bounds = array<i64: 1, 1>, scalar_prefetch = 0 : i64, scratch_operands = 1 : i64, tpu.core_type = #tpu.core_type<tc>, window_params = [{pipeline_mode = #tpu.pipeline_mode<synchronous>, transform_indices = @transform_0, window_bounds = array<i64: 64, 128>}, {pipeline_mode = #tpu.pipeline_mode<synchronous>, transform_indices = @transform_1, window_bounds = array<i64: 128, 512>}, {pipeline_mode = #tpu.pipeline_mode<synchronous>, transform_indices = @transform_2, window_bounds = array<i64: 512, 128>}, {pipeline_mode = #tpu.pipeline_mode<synchronous>, transform_indices = @transform_3, window_bounds = array<i64: 1, 512>}, {pipeline_mode = #tpu.pipeline_mode<synchronous>, transform_indices = @transform_4, window_bounds = array<i64: 1, 128>}, {transform_indices = @transform_5, window_bounds = array<i64: 64, 128>}]} {
    %c0_i32 = arith.constant 0 : i32
    %0 = arith.cmpi eq, %arg1, %c0_i32 : i32
    %1 = arith.extui %0 : i1 to i32
    %c0_i32_0 = arith.constant 0 : i32
    %2 = arith.cmpi ne, %1, %c0_i32_0 : i32
    scf.if %2 {
      %c0_16 = arith.constant 0 : index
      %c0_17 = arith.constant 0 : index
      %19 = vector.load %arg2[%c0_16, %c0_17] : memref<64x128xf32, #tpu.memory_space<vmem>>, vector<64x128xf32>
      %c0_18 = arith.constant 0 : index
      %c0_19 = arith.constant 0 : index
      %20 = vector.load %arg6[%c0_18, %c0_19] : memref<1x128xf32, #tpu.memory_space<vmem>>, vector<1x128xf32>
      %21 = vector.broadcast %20 : vector<1x128xf32> to vector<64x128xf32>
      %22 = arith.subf %19, %21 : vector<64x128xf32>
      %c0_20 = arith.constant 0 : index
      %c0_21 = arith.constant 0 : index
      %23 = vector.load %arg8[%c0_20, %c0_21] : memref<64x128xf32, #tpu.memory_space<vmem>>, vector<64x128xf32>
      tpu.vector_store %arg8[%c0_20, %c0_21], %22 {strides = array<i32>} : memref<64x128xf32, #tpu.memory_space<vmem>>, vector<64x128xf32>,
      %cst_22 = arith.constant 0.000000e+00 : f32
      %24 = vector.broadcast %cst_22 : f32 to vector<64x128xf32>
      %c0_23 = arith.constant 0 : index
      %c0_24 = arith.constant 0 : index
      %25 = vector.load %arg7[%c0_23, %c0_24] : memref<64x128xf32, #tpu.memory_space<vmem>>, vector<64x128xf32>
      tpu.vector_store %arg7[%c0_23, %c0_24], %24 {strides = array<i32>} : memref<64x128xf32, #tpu.memory_space<vmem>>, vector<64x128xf32>,
    } else {
    }
    %c0 = arith.constant 0 : index
    %c0_1 = arith.constant 0 : index
    %3 = vector.load %arg8[%c0, %c0_1] : memref<64x128xf32, #tpu.memory_space<vmem>>, vector<64x128xf32>
    %c0_2 = arith.constant 0 : index
    %c0_3 = arith.constant 0 : index
    %4 = vector.load %arg3[%c0_2, %c0_3] : memref<128x512xf32, #tpu.memory_space<vmem>>, vector<128x512xf32>
    %cst = arith.constant dense<0.000000e+00> : vector<64x512xf32>
    %5 = tpu.matmul %3, %4, %cst {dimension_numbers = #tpu.dot_dimension_numbers<[1], [0], [0], [1], [0, 0, 1, 1], [], []>} : vector<64x128xf32>, vector<128x512xf32>, vector<64x512xf32> -> vector<64x512xf32>
    %c0_4 = arith.constant 0 : index
    %c0_5 = arith.constant 0 : index
    %6 = vector.load %arg5[%c0_4, %c0_5] : memref<1x512xf32, #tpu.memory_space<vmem>>, vector<1x512xf32>
    %7 = vector.broadcast %6 : vector<1x512xf32> to vector<64x512xf32>
    %8 = arith.addf %5, %7 : vector<64x512xf32>
    %cst_6 = arith.constant 0.000000e+00 : f32
    %9 = vector.broadcast %cst_6 : f32 to vector<64x512xf32>
    %10 = arith.maximumf %8, %9 : vector<64x512xf32>
    %c0_7 = arith.constant 0 : index
    %c0_8 = arith.constant 0 : index
    %11 = vector.load %arg7[%c0_7, %c0_8] : memref<64x128xf32, #tpu.memory_space<vmem>>, vector<64x128xf32>
    %c0_9 = arith.constant 0 : index
    %c0_10 = arith.constant 0 : index
    %12 = vector.load %arg4[%c0_9, %c0_10] : memref<512x128xf32, #tpu.memory_space<vmem>>, vector<512x128xf32>
    %cst_11 = arith.constant dense<0.000000e+00> : vector<64x128xf32>
    %13 = tpu.matmul %10, %12, %cst_11 {dimension_numbers = #tpu.dot_dimension_numbers<[1], [0], [0], [1], [0, 0, 1, 1], [], []>} : vector<64x512xf32>, vector<512x128xf32>, vector<64x128xf32> -> vector<64x128xf32>
    %14 = arith.addf %11, %13 : vector<64x128xf32>
    %c0_12 = arith.constant 0 : index
    %c0_13 = arith.constant 0 : index
    %15 = vector.load %arg7[%c0_12, %c0_13] : memref<64x128xf32, #tpu.memory_space<vmem>>, vector<64x128xf32>
    tpu.vector_store %arg7[%c0_12, %c0_13], %14 {strides = array<i32>} : memref<64x128xf32, #tpu.memory_space<vmem>>, vector<64x128xf32>,
    %c0_i32_14 = arith.constant 0 : i32
    %16 = arith.cmpi eq, %arg1, %c0_i32_14 : i32
    %17 = arith.extui %16 : i1 to i32
    %c0_i32_15 = arith.constant 0 : i32
    %18 = arith.cmpi ne, %17, %c0_i32_15 : i32
    scf.if %18 {
      %c0_16 = arith.constant 0 : index
      %c0_17 = arith.constant 0 : index
      %19 = vector.load %arg7[%c0_16, %c0_17] : memref<64x128xf32, #tpu.memory_space<vmem>>, vector<64x128xf32>
      %c0_18 = arith.constant 0 : index
      %c0_19 = arith.constant 0 : index
      %20 = vector.load %arg6[%c0_18, %c0_19] : memref<1x128xf32, #tpu.memory_space<vmem>>, vector<1x128xf32>
      %21 = vector.broadcast %20 : vector<1x128xf32> to vector<64x128xf32>
      %22 = arith.addf %19, %21 : vector<64x128xf32>
      %c0_20 = arith.constant 0 : index
      %c0_21 = arith.constant 0 : index
      %23 = vector.load %arg7[%c0_20, %c0_21] : memref<64x128xf32, #tpu.memory_space<vmem>>, vector<64x128xf32>
      tpu.vector_store %arg7[%c0_20, %c0_21], %22 {strides = array<i32>} : memref<64x128xf32, #tpu.memory_space<vmem>>, vector<64x128xf32>,
    } else {
    }
    return
  }
  func.func @transform_0(%arg0: i32, %arg1: i32) -> (i32, i32) {
    %c0_i32 = arith.constant 0 : i32
    %c0_i32_0 = arith.constant 0 : i32
    return %arg0, %c0_i32 : i32, i32
  }
  func.func @transform_1(%arg0: i32, %arg1: i32) -> (i32, i32) {
    %c0_i32 = arith.constant 0 : i32
    %c0_i32_0 = arith.constant 0 : i32
    return %c0_i32, %arg1 : i32, i32
  }
  func.func @transform_2(%arg0: i32, %arg1: i32) -> (i32, i32) {
    %c0_i32 = arith.constant 0 : i32
    %c0_i32_0 = arith.constant 0 : i32
    return %arg1, %c0_i32 : i32, i32
  }
  func.func @transform_3(%arg0: i32, %arg1: i32) -> (i32, i32) {
    %c0_i32 = arith.constant 0 : i32
    %c0_i32_0 = arith.constant 0 : i32
    return %c0_i32, %arg1 : i32, i32
  }
  func.func @transform_4(%arg0: i32, %arg1: i32) -> (i32, i32) {
    %c0_i32 = arith.constant 0 : i32
    %c0_i32_0 = arith.constant 0 : i32
    %c0_i32_1 = arith.constant 0 : i32
    return %c0_i32, %c0_i32_0 : i32, i32
  }
  func.func @transform_5(%arg0: i32, %arg1: i32) -> (i32, i32) {
    %c0_i32 = arith.constant 0 : i32
    %c0_i32_0 = arith.constant 0 : i32
    return %arg0, %c0_i32 : i32, i32
  }
}

</mosaic_0001>

<llo_original>
// kernel: autoencoder_forward.1
$region0: #{autoencoder_forward.1}
  #allocation0 [shape = 'u32[]', space=smem, size = 0x4, offset = 0x4, fixed_abs, tag = 'smem constant byte address 0x4 - core index']
  #allocation1 [shape = 'u32[144,128]{1,0:T(1,128)}', space=vmem, size = 0x12000, scoped, tag = 'internal scratch']
  #allocation2 [shape = 'f32[64,128]{1,0:T(8,128)}', space=vmem, size = 0x8000, scoped, tag = 'scratch operand']
  %s0 = inlined_call_operand.hbm [shape: f32[64,128], index: 0, kind: input, shape index: {}]
  %s1 = inlined_call_operand.hbm [shape: f32[128,512], index: 1, kind: input, shape index: {}]
  %s2 = inlined_call_operand.hbm [shape: f32[512,128], index: 2, kind: input, shape index: {}]
  %s3 = inlined_call_operand.vmem [shape: f32[1,512], index: 3, kind: input, shape index: {}]
  %s4 = inlined_call_operand.vmem [shape: f32[1,128], index: 4, kind: input, shape index: {}]
  %s5 = inlined_call_operand.hbm [shape: f32[64,128], index: 5, kind: output, shape index: {}]
  %s6 = sld [smem:[#allocation0]]
  $region50: #{autoencoder_forward.1} parent=0
    _
  %s8 = ssub.s32 1, %s6
  %s9 = scalar_select 0, %s8, %s6
  $region1: #{autoencoder_forward.1} parent=0
    #allocation3 [shape = 'u8[32768]{0}', space=vmem, size = 0x8000, scoped, tag = 'input window, operand 0, single buffered']
    #allocation4 [shape = 's32[1]{0}', space=sflag, size = 0x4, scoped, tag = 'scoped memory for autoencoder_forward.1']
    #allocation5 [shape = 's32[1]{0}', space=sflag, size = 0x4, scoped, tag = 'scoped memory for autoencoder_forward.1']
    #allocation6 [shape = 'u8[262144]{0}', space=vmem, size = 0x40000, scoped, tag = 'input window, operand 1, single buffered']
    #allocation7 [shape = 's32[1]{0}', space=sflag, size = 0x4, scoped, tag = 'scoped memory for autoencoder_forward.1']
    #allocation8 [shape = 'u8[262144]{0}', space=vmem, size = 0x40000, scoped, tag = 'input window, operand 2, single buffered']
    #allocation9 [shape = 'u8[32768]{0}', space=vmem, size = 0x8000, scoped, tag = 'output window, operand 0, single buffered']
    %10 = vsyncpa [#allocation4], 0
    %11 = vsyncpa [#allocation7], 0
    %12 = vsyncpa [#allocation5], 0
    // Predicated region
    $region2: #{autoencoder_forward.1} parent=1 // pred_check
      _
    $region3: #{autoencoder_forward.1} parent=1 // pred_check_branch
      %14 = sbr.rel (0) target = $region5
    $region4: #{autoencoder_forward.1} parent=1 // pred_region
      %s16 = ssub.s32 1024, 1024
      %17 = vsyncadd [#allocation4], %s16
      %s18 = sshll.u32 [#allocation3], 4
      %s19 = int_to_ptr.vmem [resolvable:$true] %s18
      %24 = dma.hbm_to_vmem [thread:$0]  %s0, 1024, %s19, [#allocation4], 128, 128, 8
    $region5: #{autoencoder_forward.1} parent=1 // pred_fallthru
      _
    // Predicated region
    $region6: #{autoencoder_forward.1} parent=1 // pred_check
      _
    $region7: #{autoencoder_forward.1} parent=1 // pred_check_branch
      %26 = sbr.rel (0) target = $region9
    $region8: #{autoencoder_forward.1} parent=1 // pred_region
      %s28 = ssub.s32 8192, 8192
      %29 = vsyncadd [#allocation7], %s28
      %s30 = sshll.u32 [#allocation6], 4
      %s31 = int_to_ptr.vmem [resolvable:$true] %s30
      %36 = dma.hbm_to_vmem [thread:$0]  %s1, 8192, %s31, [#allocation7], 512, 512, 32
    $region9: #{autoencoder_forward.1} parent=1 // pred_fallthru
      _
    // Predicated region
    $region10: #{autoencoder_forward.1} parent=1 // pred_check
      _
    $region11: #{autoencoder_forward.1} parent=1 // pred_check_branch
      %38 = sbr.rel (0) target = $region13
    $region12: #{autoencoder_forward.1} parent=1 // pred_region
      %s40 = ssub.s32 8192, 8192
      %41 = vsyncadd [#allocation7], %s40
      %s42 = sshll.u32 [#allocation8], 4
      %s43 = int_to_ptr.vmem [resolvable:$true] %s42
      %48 = dma.hbm_to_vmem [thread:$0]  %s2, 8192, %s43, [#allocation7], 128, 128, 8
    $region13: #{autoencoder_forward.1} parent=1 // pred_fallthru
      _
    // Predicated region
    $region14: #{autoencoder_forward.1} parent=1 // pred_check
      _
    $region15: #{autoencoder_forward.1} parent=1 // pred_check_branch
      %50 = sbr.rel (0) target = $region17
    $region16: #{autoencoder_forward.1} parent=1 // pred_region
      _
    $region17: #{autoencoder_forward.1} parent=1 // pred_fallthru
      _
    // Predicated region
    $region18: #{autoencoder_forward.1} parent=1 // pred_check
      _
    $region19: #{autoencoder_forward.1} parent=1 // pred_check_branch
      %52 = sbr.rel (0) target = $region21
    $region20: #{autoencoder_forward.1} parent=1 // pred_region
      _
    $region21: #{autoencoder_forward.1} parent=1 // pred_fallthru
      _
    // Predicated region
    $region22: #{autoencoder_forward.1} parent=1 // pred_check
      _
    $region23: #{autoencoder_forward.1} parent=1 // pred_check_branch
      %54 = sbr.rel (0) target = $region25
    $region24: #{autoencoder_forward.1} parent=1 // pred_region
      %55 = dma.done [#allocation4], 1024
    $region25: #{autoencoder_forward.1} parent=1 // pred_fallthru
      _
    // Predicated region
    $region26: #{autoencoder_forward.1} parent=1 // pred_check
      _
    $region27: #{autoencoder_forward.1} parent=1 // pred_check_branch
      %57 = sbr.rel (0) target = $region29
    $region28: #{autoencoder_forward.1} parent=1 // pred_region
      %58 = dma.done [#allocation7], 8192
    $region29: #{autoencoder_forward.1} parent=1 // pred_fallthru
      _
    // Predicated region
    $region30: #{autoencoder_forward.1} parent=1 // pred_check
      _
    $region31: #{autoencoder_forward.1} parent=1 // pred_check_branch
      %60 = sbr.rel (0) target = $region33
    $region32: #{autoencoder_forward.1} parent=1 // pred_region
      %61 = dma.done [#allocation7], 8192
    $region33: #{autoencoder_forward.1} parent=1 // pred_fallthru
      _
    %p62 = scmp.eq.s32.totalorder 0, 0
    // Predicated region
    $region34: #{autoencoder_forward.1} parent=1 // pred_check
      %p63 = pneg %p62
    $region35: #{autoencoder_forward.1} parent=1 // pred_check_branch
      %65 = sbr.rel (%p63) target = $region37
    $region36: #{autoencoder_forward.1} parent=1 // pred_region
      %v66 = vld [vmem:[#allocation3] sm:$0xff]
      %v67 = vld [vmem:[#allocation3 + $0x8] sm:$0xff]
      %v68 = vld [vmem:[#allocation3 + $0x10] sm:$0xff]
      %v69 = vld [vmem:[#allocation3 + $0x18] sm:$0xff]
      %v70 = vld [vmem:[#allocation3 + $0x20] sm:$0xff]
      %v71 = vld [vmem:[#allocation3 + $0x28] sm:$0xff]
      %v72 = vld [vmem:[#allocation3 + $0x30] sm:$0xff]
      %v73 = vld [vmem:[#allocation3 + $0x38] sm:$0xff]
      %v74 = vld [vmem:[%s4] sm:$0x1]
      %v76 = vlaneseq
      %v77 = vshrl.u32 %v76, 7
      %v78 = vsub.s32 0, %v77
      %v79 = vrot.slane %v74, %v78
      %v81 = vsub.f32 %v66, %v79
      %v82 = vsub.f32 %v67, %v79
      %v83 = vsub.f32 %v68, %v79
      %v84 = vsub.f32 %v69, %v79
      %v85 = vsub.f32 %v70, %v79
      %v86 = vsub.f32 %v71, %v79
      %v87 = vsub.f32 %v72, %v79
      %v88 = vsub.f32 %v73, %v79
      %89 = vst [vmem:[#allocation2] sm:$0xff] %v81
      %90 = vst [vmem:[#allocation2 + $0x8] sm:$0xff] %v82
      %91 = vst [vmem:[#allocation2 + $0x10] sm:$0xff] %v83
      %92 = vst [vmem:[#allocation2 + $0x18] sm:$0xff] %v84
      %93 = vst [vmem:[#allocation2 + $0x20] sm:$0xff] %v85
      %94 = vst [vmem:[#allocation2 + $0x28] sm:$0xff] %v86
      %95 = vst [vmem:[#allocation2 + $0x30] sm:$0xff] %v87
      %96 = vst [vmem:[#allocation2 + $0x38] sm:$0xff] %v88
      %97 = vst [vmem:[#allocation9] sm:$0xff] 0.0
      %98 = vst [vmem:[#allocation9 + $0x8] sm:$0xff] 0.0
      %99 = vst [vmem:[#allocation9 + $0x10] sm:$0xff] 0.0
      %100 = vst [vmem:[#allocation9 + $0x18] sm:$0xff] 0.0
      %101 = vst [vmem:[#allocation9 + $0x20] sm:$0xff] 0.0
      %102 = vst [vmem:[#allocation9 + $0x28] sm:$0xff] 0.0
      %103 = vst [vmem:[#allocation9 + $0x30] sm:$0xff] 0.0
      %104 = vst [vmem:[#allocation9 + $0x38] sm:$0xff] 0.0
    $region37: #{autoencoder_forward.1} parent=1 // pred_fallthru
      _
    %v105 = vld [vmem:[#allocation2] sm:$0xff]
    %v106 = vld [vmem:[#allocation2 + $0x8] sm:$0xff]
    %v107 = vld [vmem:[#allocation2 + $0x10] sm:$0xff]
    %v108 = vld [vmem:[#allocation2 + $0x18] sm:$0xff]
    %v109 = vld [vmem:[#allocation2 + $0x20] sm:$0xff]
    %v110 = vld [vmem:[#allocation2 + $0x28] sm:$0xff]
    %v111 = vld [vmem:[#allocation2 + $0x30] sm:$0xff]
    %v112 = vld [vmem:[#allocation2 + $0x38] sm:$0xff]
    %v113 = vld [vmem:[#allocation6] sm:$0xff]
    %v114 = vld [vmem:[#allocation6 + $0x8] sm:$0xff]
    %v115 = vld [vmem:[#allocation6 + $0x10] sm:$0xff]
    %v116 = vld [vmem:[#allocation6 + $0x18] sm:$0xff]
    %v117 = vld [vmem:[#allocation6 + $0x20] sm:$0xff]
    %v118 = vld [vmem:[#allocation6 + $0x28] sm:$0xff]
    %v119 = vld [vmem:[#allocation6 + $0x30] sm:$0xff]
    %v120 = vld [vmem:[#allocation6 + $0x38] sm:$0xff]
    %v121 = vld [vmem:[#allocation6 + $0x40] sm:$0xff]
    %v122 = vld [vmem:[#allocation6 + $0x48] sm:$0xff]
    %v123 = vld [vmem:[#allocation6 + $0x50] sm:$0xff]
    %v124 = vld [vmem:[#allocation6 + $0x58] sm:$0xff]
    %v125 = vld [vmem:[#allocation6 + $0x60] sm:$0xff]
    %v126 = vld [vmem:[#allocation6 + $0x68] sm:$0xff]
    %v127 = vld [vmem:[#allocation6 + $0x70] sm:$0xff]
    %v128 = vld [vmem:[#allocation6 + $0x78] sm:$0xff]
    %v129 = vld [vmem:[#allocation6 + $0x80] sm:$0xff]
    %v130 = vld [vmem:[#allocation6 + $0x88] sm:$0xff]
    %v131 = vld [vmem:[#allocation6 + $0x90] sm:$0xff]
    %v132 = vld [vmem:[#allocation6 + $0x98] sm:$0xff]
    %v133 = vld [vmem:[#allocation6 + $0xa0] sm:$0xff]
    %v134 = vld [vmem:[#allocation6 + $0xa8] sm:$0xff]
    %v135 = vld [vmem:[#allocation6 + $0xb0] sm:$0xff]
    %v136 = vld [vmem:[#allocation6 + $0xb8] sm:$0xff]
    %v137 = vld [vmem:[#allocation6 + $0xc0] sm:$0xff]
    %v138 = vld [vmem:[#allocation6 + $0xc8] sm:$0xff]
    %v139 = vld [vmem:[#allocation6 + $0xd0] sm:$0xff]
    %v140 = vld [vmem:[#allocation6 + $0xd8] sm:$0xff]
    %v141 = vld [vmem:[#allocation6 + $0xe0] sm:$0xff]
    %v142 = vld [vmem:[#allocation6 + $0xe8] sm:$0xff]
    %v143 = vld [vmem:[#allocation6 + $0xf0] sm:$0xff]
    %v144 = vld [vmem:[#allocation6 + $0xf8] sm:$0xff]
    %v145 = vld [vmem:[#allocation6 + $0x100] sm:$0xff]
    %v146 = vld [vmem:[#allocation6 + $0x108] sm:$0xff]
    %v147 = vld [vmem:[#allocation6 + $0x110] sm:$0xff]
    %v148 = vld [vmem:[#allocation6 + $0x118] sm:$0xff]
    %v149 = vld [vmem:[#allocation6 + $0x120] sm:$0xff]
    %v150 = vld [vmem:[#allocation6 + $0x128] sm:$0xff]
    %v151 = vld [vmem:[#allocation6 + $0x130] sm:$0xff]
    %v152 = vld [vmem:[#allocation6 + $0x138] sm:$0xff]
    %v153 = vld [vmem:[#allocation6 + $0x140] sm:$0xff]
    %v154 = vld [vmem:[#allocation6 + $0x148] sm:$0xff]
    %v155 = vld [vmem:[#allocation6 + $0x150] sm:$0xff]
    %v156 = vld [vmem:[#allocation6 + $0x158] sm:$0xff]
    %v157 = vld [vmem:[#allocation6 + $0x160] sm:$0xff]
    %v158 = vld [vmem:[#allocation6 + $0x168] sm:$0xff]
    %v159 = vld [vmem:[#allocation6 + $0x170] sm:$0xff]
    %v160 = vld [vmem:[#allocation6 + $0x178] sm:$0xff]
    %v161 = vld [vmem:[#allocation6 + $0x180] sm:$0xff]
    %v162 = vld [vmem:[#allocation6 + $0x188] sm:$0xff]
    %v163 = vld [vmem:[#allocation6 + $0x190] sm:$0xff]
    %v164 = vld [vmem:[#allocation6 + $0x198] sm:$0xff]
    %v165 = vld [vmem:[#allocation6 + $0x1a0] sm:$0xff]
    %v166 = vld [vmem:[#allocation6 + $0x1a8] sm:$0xff]
    %v167 = vld [vmem:[#allocation6 + $0x1b0] sm:$0xff]
    %v168 = vld [vmem:[#allocation6 + $0x1b8] sm:$0xff]
    %v169 = vld [vmem:[#allocation6 + $0x1c0] sm:$0xff]
    %v170 = vld [vmem:[#allocation6 + $0x1c8] sm:$0xff]
    %v171 = vld [vmem:[#allocation6 + $0x1d0] sm:$0xff]
    %v172 = vld [vmem:[#allocation6 + $0x1d8] sm:$0xff]
    %v173 = vld [vmem:[#allocation6 + $0x1e0] sm:$0xff]
    %v174 = vld [vmem:[#allocation6 + $0x1e8] sm:$0xff]
    %v175 = vld [vmem:[#allocation6 + $0x1f0] sm:$0xff]
    %v176 = vld [vmem:[#allocation6 + $0x1f8] sm:$0xff]
    %v177 = vld [vmem:[%s3] sm:$0xf]
    %v179 = vlaneseq
    %v180 = vshrl.u32 %v179, 7
    %v181 = vsub.s32 0, %v180
    %v182 = vrot.slane %v177, %v181
    %v183 = vlaneseq
    %v184 = vshrl.u32 %v183, 7
    %v185 = vsub.s32 1, %v184
    %v186 = vrot.slane %v177, %v185
    %v187 = vlaneseq
    %v188 = vshrl.u32 %v187, 7
    %v189 = vsub.s32 2, %v188
    %v190 = vrot.slane %v177, %v189
    %v191 = vlaneseq
    %v192 = vshrl.u32 %v191, 7
    %v193 = vsub.s32 3, %v192
    %v194 = vrot.slane %v177, %v193
    %199 = vmatprep.subr.mxu0 %v174
    %200 = vmatpush1.msra.mxu0 %v173
    %201 = vmatprep.subr.mxu0 %v170
    %202 = vmatpush1.msra.mxu0 %v169
    %203 = vmatprep.subr.mxu0 %v166
    %204 = vmatpush1.msra.mxu0 %v165
    %205 = vmatprep.subr.mxu0 %v162
    %206 = vmatpush1.msra.mxu0 %v161
    %207 = vmatprep.subr.mxu0 %v158
    %208 = vmatpush1.msra.mxu0 %v157
    %209 = vmatprep.subr.mxu0 %v154
    %210 = vmatpush1.msra.mxu0 %v153
    %211 = vmatprep.subr.mxu0 %v150
    %212 = vmatpush1.msra.mxu0 %v149
    %213 = vmatprep.subr.mxu0 %v146
    %214 = vmatpush1.msra.mxu0 %v145
    %215 = vmatprep.subr.mxu0 %v142
    %216 = vmatpush1.msra.mxu0 %v141
    %217 = vmatprep.subr.mxu0 %v138
    %218 = vmatpush1.msra.mxu0 %v137
    %219 = vmatprep.subr.mxu0 %v134
    %220 = vmatpush1.msra.mxu0 %v133
    %221 = vmatprep.subr.mxu0 %v130
    %222 = vmatpush1.msra.mxu0 %v129
    %223 = vmatprep.subr.mxu0 %v126
    %224 = vmatpush1.msra.mxu0 %v125
    %225 = vmatprep.subr.mxu0 %v122
    %226 = vmatpush1.msra.mxu0 %v121
    %227 = vmatprep.subr.mxu0 %v118
    %228 = vmatpush1.msra.mxu0 %v117
    %229 = vmatprep.subr.mxu0 %v114
    %230 = vmatpush1.msra.mxu0 %v113
    %231 = vmatprep.subr.mxu0 0.0
    %232 = vmatpush2.msra.mxu0 0.0
    %233 = vmatprep.subr.mxu0 0.0
    %234 = vmatpush2.msra.mxu0 0.0
    %235 = vmatprep.subr.mxu0 0.0
    %236 = vmatpush2.msra.mxu0 0.0
    %237 = vmatprep.subr.mxu0 0.0
    %238 = vmatpush2.msra.mxu0 0.0
    %239 = vmatprep.subr.mxu0 0.0
    %240 = vmatpush2.msra.mxu0 0.0
    %241 = vmatprep.subr.mxu0 0.0
    %242 = vmatpush2.msra.mxu0 0.0
    %243 = vmatprep.subr.mxu0 0.0
    %244 = vmatpush2.msra.mxu0 0.0
    %245 = vmatprep.subr.mxu0 0.0
    %246 = vmatpush2.msra.mxu0 0.0
    %247 = vmatprep.subr.mxu0 0.0
    %248 = vmatpush2.msra.mxu0 0.0
    %249 = vmatprep.subr.mxu0 0.0
    %250 = vmatpush2.msra.mxu0 0.0
    %251 = vmatprep.subr.mxu0 0.0
    %252 = vmatpush2.msra.mxu0 0.0
    %253 = vmatprep.subr.mxu0 0.0
    %254 = vmatpush2.msra.mxu0 0.0
    %255 = vmatprep.subr.mxu0 0.0
    %256 = vmatpush2.msra.mxu0 0.0
    %257 = vmatprep.subr.mxu0 0.0
    %258 = vmatpush2.msra.mxu0 0.0
    %259 = vmatprep.subr.mxu0 0.0
    %260 = vmatpush2.msra.mxu0 0.0
    %261 = vmatprep.subr.mxu0 0.0
    %262 = vmatpush2.msra.mxu0 0.0
    %263 = vmatprep.mubr.f32.mxu0 0.0
    %264 = vmatmul.mubr.f32.gmra.mxu0 %v105
    %v265 = vpop.f32.mrf.mxu0
    %v266 = vadd.f32 %v182, %v265
    %v267 = vpop.f32.mrf.mxu0
    %v268 = vadd.f32 %v186, %v267
    %269 = vmatprep.mubr.f32.mxu0 0.0
    %270 = vmatmul.mubr.f32.gmra.mxu0 %v106
    %v271 = vpop.f32.mrf.mxu0
    %v272 = vadd.f32 %v182, %v271
    %v273 = vpop.f32.mrf.mxu0
    %v274 = vadd.f32 %v186, %v273
    %275 = vmatprep.mubr.f32.mxu0 0.0
    %276 = vmatmul.mubr.f32.gmra.mxu0 %v107
    %v277 = vpop.f32.mrf.mxu0
    %v278 = vadd.f32 %v182, %v277
    %v279 = vpop.f32.mrf.mxu0
    %v280 = vadd.f32 %v186, %v279
    %281 = vmatprep.mubr.f32.mxu0 0.0
    %282 = vmatmul.mubr.f32.gmra.mxu0 %v108
    %v283 = vpop.f32.mrf.mxu0
    %v284 = vadd.f32 %v182, %v283
    %v285 = vpop.f32.mrf.mxu0
    %v286 = vadd.f32 %v186, %v285
    %287 = vmatprep.mubr.f32.mxu0 0.0
    %288 = vmatmul.mubr.f32.gmra.mxu0 %v109
    %v289 = vpop.f32.mrf.mxu0
    %v290 = vadd.f32 %v182, %v289
    %v291 = vpop.f32.mrf.mxu0
    %v292 = vadd.f32 %v186, %v291
    %293 = vmatprep.mubr.f32.mxu0 0.0
    %294 = vmatmul.mubr.f32.gmra.mxu0 %v110
    %v295 = vpop.f32.mrf.mxu0
    %v296 = vadd.f32 %v182, %v295
    %v297 = vpop.f32.mrf.mxu0
    %v298 = vadd.f32 %v186, %v297
    %299 = vmatprep.mubr.f32.mxu0 0.0
    %300 = vmatmul.mubr.f32.gmra.mxu0 %v111
    %v301 = vpop.f32.mrf.mxu0
    %v302 = vadd.f32 %v182, %v301
    %v303 = vpop.f32.mrf.mxu0
    %v304 = vadd.f32 %v186, %v303
    %305 = vmatprep.mubr.f32.mxu0 0.0
    %306 = vmatmul.mubr.f32.gmra.mxu0 %v112
    %v307 = vpop.f32.mrf.mxu0
    %v308 = vadd.f32 %v182, %v307
    %v309 = vpop.f32.mrf.mxu0
    %v310 = vadd.f32 %v186, %v309
    %311 = vdwg.mxu0
    %312 = vmatprep.subr.mxu0 %v176
    %313 = vmatpush1.msra.mxu0 %v175
    %314 = vmatprep.subr.mxu0 %v172
    %315 = vmatpush1.msra.mxu0 %v171
    %316 = vmatprep.subr.mxu0 %v168
    %317 = vmatpush1.msra.mxu0 %v167
    %318 = vmatprep.subr.mxu0 %v164
    %319 = vmatpush1.msra.mxu0 %v163
    %320 = vmatprep.subr.mxu0 %v160
    %321 = vmatpush1.msra.mxu0 %v159
    %322 = vmatprep.subr.mxu0 %v156
    %323 = vmatpush1.msra.mxu0 %v155
    %324 = vmatprep.subr.mxu0 %v152
    %325 = vmatpush1.msra.mxu0 %v151
    %326 = vmatprep.subr.mxu0 %v148
    %327 = vmatpush1.msra.mxu0 %v147
    %328 = vmatprep.subr.mxu0 %v144
    %329 = vmatpush1.msra.mxu0 %v143
    %330 = vmatprep.subr.mxu0 %v140
    %331 = vmatpush1.msra.mxu0 %v139
    %332 = vmatprep.subr.mxu0 %v136
    %333 = vmatpush1.msra.mxu0 %v135
    %334 = vmatprep.subr.mxu0 %v132
    %335 = vmatpush1.msra.mxu0 %v131
    %336 = vmatprep.subr.mxu0 %v128
    %337 = vmatpush1.msra.mxu0 %v127
    %338 = vmatprep.subr.mxu0 %v124
    %339 = vmatpush1.msra.mxu0 %v123
    %340 = vmatprep.subr.mxu0 %v120
    %341 = vmatpush1.msra.mxu0 %v119
    %342 = vmatprep.subr.mxu0 %v116
    %343 = vmatpush1.msra.mxu0 %v115
    %344 = vmatprep.subr.mxu0 0.0
    %345 = vmatpush2.msra.mxu0 0.0
    %346 = vmatprep.subr.mxu0 0.0
    %347 = vmatpush2.msra.mxu0 0.0
    %348 = vmatprep.subr.mxu0 0.0
    %349 = vmatpush2.msra.mxu0 0.0
    %350 = vmatprep.subr.mxu0 0.0
    %351 = vmatpush2.msra.mxu0 0.0
    %352 = vmatprep.subr.mxu0 0.0
    %353 = vmatpush2.msra.mxu0 0.0
    %354 = vmatprep.subr.mxu0 0.0
    %355 = vmatpush2.msra.mxu0 0.0
    %356 = vmatprep.subr.mxu0 0.0
    %357 = vmatpush2.msra.mxu0 0.0
    %358 = vmatprep.subr.mxu0 0.0
    %359 = vmatpush2.msra.mxu0 0.0
    %360 = vmatprep.subr.mxu0 0.0
    %361 = vmatpush2.msra.mxu0 0.0
    %362 = vmatprep.subr.mxu0 0.0
    %363 = vmatpush2.msra.mxu0 0.0
    %364 = vmatprep.subr.mxu0 0.0
    %365 = vmatpush2.msra.mxu0 0.0
    %366 = vmatprep.subr.mxu0 0.0
    %367 = vmatpush2.msra.mxu0 0.0
    %368 = vmatprep.subr.mxu0 0.0
    %369 = vmatpush2.msra.mxu0 0.0
    %370 = vmatprep.subr.mxu0 0.0
    %371 = vmatpush2.msra.mxu0 0.0
    %372 = vmatprep.subr.mxu0 0.0
    %373 = vmatpush2.msra.mxu0 0.0
    %374 = vmatprep.subr.mxu0 0.0
    %375 = vmatpush2.msra.mxu0 0.0
    %376 = vmatprep.mubr.f32.mxu0 0.0
    %377 = vmatmul.mubr.f32.gmra.mxu0 %v105
    %v378 = vpop.f32.mrf.mxu0
    %v379 = vadd.f32 %v190, %v378
    %v380 = vpop.f32.mrf.mxu0
    %v381 = vadd.f32 %v194, %v380
    %382 = vmatprep.mubr.f32.mxu0 0.0
    %383 = vmatmul.mubr.f32.gmra.mxu0 %v106
    %v384 = vpop.f32.mrf.mxu0
    %v385 = vadd.f32 %v190, %v384
    %v386 = vpop.f32.mrf.mxu0
    %v387 = vadd.f32 %v194, %v386
    %388 = vmatprep.mubr.f32.mxu0 0.0
    %389 = vmatmul.mubr.f32.gmra.mxu0 %v107
    %v390 = vpop.f32.mrf.mxu0
    %v391 = vadd.f32 %v190, %v390
    %v392 = vpop.f32.mrf.mxu0
    %v393 = vadd.f32 %v194, %v392
    %394 = vmatprep.mubr.f32.mxu0 0.0
    %395 = vmatmul.mubr.f32.gmra.mxu0 %v108
    %v396 = vpop.f32.mrf.mxu0
    %v397 = vadd.f32 %v190, %v396
    %v398 = vpop.f32.mrf.mxu0
    %v399 = vadd.f32 %v194, %v398
    %400 = vmatprep.mubr.f32.mxu0 0.0
    %401 = vmatmul.mubr.f32.gmra.mxu0 %v109
    %v402 = vpop.f32.mrf.mxu0
    %v403 = vadd.f32 %v190, %v402
    %v404 = vpop.f32.mrf.mxu0
    %v405 = vadd.f32 %v194, %v404
    %406 = vmatprep.mubr.f32.mxu0 0.0
    %407 = vmatmul.mubr.f32.gmra.mxu0 %v110
    %v408 = vpop.f32.mrf.mxu0
    %v409 = vadd.f32 %v190, %v408
    %v410 = vpop.f32.mrf.mxu0
    %v411 = vadd.f32 %v194, %v410
    %412 = vmatprep.mubr.f32.mxu0 0.0
    %413 = vmatmul.mubr.f32.gmra.mxu0 %v111
    %v414 = vpop.f32.mrf.mxu0
    %v415 = vadd.f32 %v190, %v414
    %v416 = vpop.f32.mrf.mxu0
    %v417 = vadd.f32 %v194, %v416
    %418 = vmatprep.mubr.f32.mxu0 0.0
    %419 = vmatmul.mubr.f32.gmra.mxu0 %v112
    %v420 = vpop.f32.mrf.mxu0
    %v421 = vadd.f32 %v190, %v420
    %v422 = vpop.f32.mrf.mxu0
    %v423 = vadd.f32 %v194, %v422
    %424 = vdwg.mxu0
    %v425 = vmax.f32 %v266, 0.0
    %v426 = vmax.f32 %v268, 0.0
    %v427 = vmax.f32 %v379, 0.0
    %v428 = vmax.f32 %v381, 0.0
    %v429 = vmax.f32 %v272, 0.0
    %v430 = vmax.f32 %v274, 0.0
    %v431 = vmax.f32 %v385, 0.0
    %v432 = vmax.f32 %v387, 0.0
    %v433 = vmax.f32 %v278, 0.0
    %v434 = vmax.f32 %v280, 0.0
    %v435 = vmax.f32 %v391, 0.0
    %v436 = vmax.f32 %v393, 0.0
    %v437 = vmax.f32 %v284, 0.0
    %v438 = vmax.f32 %v286, 0.0
    %v439 = vmax.f32 %v397, 0.0
    %v440 = vmax.f32 %v399, 0.0
    %v441 = vmax.f32 %v290, 0.0
    %v442 = vmax.f32 %v292, 0.0
    %v443 = vmax.f32 %v403, 0.0
    %v444 = vmax.f32 %v405, 0.0
    %v445 = vmax.f32 %v296, 0.0
    %v446 = vmax.f32 %v298, 0.0
    %v447 = vmax.f32 %v409, 0.0
    %v448 = vmax.f32 %v411, 0.0
    %v449 = vmax.f32 %v302, 0.0
    %v450 = vmax.f32 %v304, 0.0
    %v451 = vmax.f32 %v415, 0.0
    %v452 = vmax.f32 %v417, 0.0
    %v453 = vmax.f32 %v308, 0.0
    %v454 = vmax.f32 %v310, 0.0
    %v455 = vmax.f32 %v421, 0.0
    %v456 = vmax.f32 %v423, 0.0
    %v457 = vld [vmem:[#allocation9] sm:$0xff]
    %v458 = vld [vmem:[#allocation9 + $0x8] sm:$0xff]
    %v459 = vld [vmem:[#allocation9 + $0x10] sm:$0xff]
    %v460 = vld [vmem:[#allocation9 + $0x18] sm:$0xff]
    %v461 = vld [vmem:[#allocation9 + $0x20] sm:$0xff]
    %v462 = vld [vmem:[#allocation9 + $0x28] sm:$0xff]
    %v463 = vld [vmem:[#allocation9 + $0x30] sm:$0xff]
    %v464 = vld [vmem:[#allocation9 + $0x38] sm:$0xff]
    %v465 = vld [vmem:[#allocation8] sm:$0xff]
    %v466 = vld [vmem:[#allocation8 + $0x8] sm:$0xff]
    %v467 = vld [vmem:[#allocation8 + $0x10] sm:$0xff]
    %v468 = vld [vmem:[#allocation8 + $0x18] sm:$0xff]
    %v469 = vld [vmem:[#allocation8 + $0x20] sm:$0xff]
    %v470 = vld [vmem:[#allocation8 + $0x28] sm:$0xff]
    %v471 = vld [vmem:[#allocation8 + $0x30] sm:$0xff]
    %v472 = vld [vmem:[#allocation8 + $0x38] sm:$0xff]
    %v473 = vld [vmem:[#allocation8 + $0x40] sm:$0xff]
    %v474 = vld [vmem:[#allocation8 + $0x48] sm:$0xff]
    %v475 = vld [vmem:[#allocation8 + $0x50] sm:$0xff]
    %v476 = vld [vmem:[#allocation8 + $0x58] sm:$0xff]
    %v477 = vld [vmem:[#allocation8 + $0x60] sm:$0xff]
    %v478 = vld [vmem:[#allocation8 + $0x68] sm:$0xff]
    %v479 = vld [vmem:[#allocation8 + $0x70] sm:$0xff]
    %v480 = vld [vmem:[#allocation8 + $0x78] sm:$0xff]
    %v481 = vld [vmem:[#allocation8 + $0x80] sm:$0xff]
    %v482 = vld [vmem:[#allocation8 + $0x88] sm:$0xff]
    %v483 = vld [vmem:[#allocation8 + $0x90] sm:$0xff]
    %v484 = vld [vmem:[#allocation8 + $0x98] sm:$0xff]
    %v485 = vld [vmem:[#allocation8 + $0xa0] sm:$0xff]
    %v486 = vld [vmem:[#allocation8 + $0xa8] sm:$0xff]
    %v487 = vld [vmem:[#allocation8 + $0xb0] sm:$0xff]
    %v488 = vld [vmem:[#allocation8 + $0xb8] sm:$0xff]
    %v489 = vld [vmem:[#allocation8 + $0xc0] sm:$0xff]
    %v490 = vld [vmem:[#allocation8 + $0xc8] sm:$0xff]
    %v491 = vld [vmem:[#allocation8 + $0xd0] sm:$0xff]
    %v492 = vld [vmem:[#allocation8 + $0xd8] sm:$0xff]
    %v493 = vld [vmem:[#allocation8 + $0xe0] sm:$0xff]
    %v494 = vld [vmem:[#allocation8 + $0xe8] sm:$0xff]
    %v495 = vld [vmem:[#allocation8 + $0xf0] sm:$0xff]
    %v496 = vld [vmem:[#allocation8 + $0xf8] sm:$0xff]
    %v497 = vld [vmem:[#allocation8 + $0x100] sm:$0xff]
    %v498 = vld [vmem:[#allocation8 + $0x108] sm:$0xff]
    %v499 = vld [vmem:[#allocation8 + $0x110] sm:$0xff]
    %v500 = vld [vmem:[#allocation8 + $0x118] sm:$0xff]
    %v501 = vld [vmem:[#allocation8 + $0x120] sm:$0xff]
    %v502 = vld [vmem:[#allocation8 + $0x128] sm:$0xff]
    %v503 = vld [vmem:[#allocation8 + $0x130] sm:$0xff]
    %v504 = vld [vmem:[#allocation8 + $0x138] sm:$0xff]
    %v505 = vld [vmem:[#allocation8 + $0x140] sm:$0xff]
    %v506 = vld [vmem:[#allocation8 + $0x148] sm:$0xff]
    %v507 = vld [vmem:[#allocation8 + $0x150] sm:$0xff]
    %v508 = vld [vmem:[#allocation8 + $0x158] sm:$0xff]
    %v509 = vld [vmem:[#allocation8 + $0x160] sm:$0xff]
    %v510 = vld [vmem:[#allocation8 + $0x168] sm:$0xff]
    %v511 = vld [vmem:[#allocation8 + $0x170] sm:$0xff]
    %v512 = vld [vmem:[#allocation8 + $0x178] sm:$0xff]
    %v513 = vld [vmem:[#allocation8 + $0x180] sm:$0xff]
    %v514 = vld [vmem:[#allocation8 + $0x188] sm:$0xff]
    %v515 = vld [vmem:[#allocation8 + $0x190] sm:$0xff]
    %v516 = vld [vmem:[#allocation8 + $0x198] sm:$0xff]
    %v517 = vld [vmem:[#allocation8 + $0x1a0] sm:$0xff]
    %v518 = vld [vmem:[#allocation8 + $0x1a8] sm:$0xff]
    %v519 = vld [vmem:[#allocation8 + $0x1b0] sm:$0xff]
    %v520 = vld [vmem:[#allocation8 + $0x1b8] sm:$0xff]
    %v521 = vld [vmem:[#allocation8 + $0x1c0] sm:$0xff]
    %v522 = vld [vmem:[#allocation8 + $0x1c8] sm:$0xff]
    %v523 = vld [vmem:[#allocation8 + $0x1d0] sm:$0xff]
    %v524 = vld [vmem:[#allocation8 + $0x1d8] sm:$0xff]
    %v525 = vld [vmem:[#allocation8 + $0x1e0] sm:$0xff]
    %v526 = vld [vmem:[#allocation8 + $0x1e8] sm:$0xff]
    %v527 = vld [vmem:[#allocation8 + $0x1f0] sm:$0xff]
    %v528 = vld [vmem:[#allocation8 + $0x1f8] sm:$0xff]
    %529 = vmatprep.subr.mxu0 0.0
    %530 = vmatpush1.msra.mxu0 %v480
    %531 = vmatprep.subr.mxu0 0.0
    %532 = vmatpush1.msra.mxu0 %v479
    %533 = vmatprep.subr.mxu0 0.0
    %534 = vmatpush1.msra.mxu0 %v478
    %535 = vmatprep.subr.mxu0 0.0
    %536 = vmatpush1.msra.mxu0 %v477
    %537 = vmatprep.subr.mxu0 0.0
    %538 = vmatpush1.msra.mxu0 %v476
    %539 = vmatprep.subr.mxu0 0.0
    %540 = vmatpush1.msra.mxu0 %v475
    %541 = vmatprep.subr.mxu0 0.0
    %542 = vmatpush1.msra.mxu0 %v474
    %543 = vmatprep.subr.mxu0 0.0
    %544 = vmatpush1.msra.mxu0 %v473
    %545 = vmatprep.subr.mxu0 0.0
    %546 = vmatpush1.msra.mxu0 %v472
    %547 = vmatprep.subr.mxu0 0.0
    %548 = vmatpush1.msra.mxu0 %v471
    %549 = vmatprep.subr.mxu0 0.0
    %550 = vmatpush1.msra.mxu0 %v470
    %551 = vmatprep.subr.mxu0 0.0
    %552 = vmatpush1.msra.mxu0 %v469
    %553 = vmatprep.subr.mxu0 0.0
    %554 = vmatpush1.msra.mxu0 %v468
    %555 = vmatprep.subr.mxu0 0.0
    %556 = vmatpush1.msra.mxu0 %v467
    %557 = vmatprep.subr.mxu0 0.0
    %558 = vmatpush1.msra.mxu0 %v466
    %559 = vmatprep.subr.mxu0 0.0
    %560 = vmatpush1.msra.mxu0 %v465
    %561 = vmatprep.subr.mxu0 0.0
    %562 = vmatpush2.msra.mxu0 %v496
    %563 = vmatprep.subr.mxu0 0.0
    %564 = vmatpush2.msra.mxu0 %v495
    %565 = vmatprep.subr.mxu0 0.0
    %566 = vmatpush2.msra.mxu0 %v494
    %567 = vmatprep.subr.mxu0 0.0
    %568 = vmatpush2.msra.mxu0 %v493
    %569 = vmatprep.subr.mxu0 0.0
    %570 = vmatpush2.msra.mxu0 %v492
    %571 = vmatprep.subr.mxu0 0.0
    %572 = vmatpush2.msra.mxu0 %v491
    %573 = vmatprep.subr.mxu0 0.0
    %574 = vmatpush2.msra.mxu0 %v490
    %575 = vmatprep.subr.mxu0 0.0
    %576 = vmatpush2.msra.mxu0 %v489
    %577 = vmatprep.subr.mxu0 0.0
    %578 = vmatpush2.msra.mxu0 %v488
    %579 = vmatprep.subr.mxu0 0.0
    %580 = vmatpush2.msra.mxu0 %v487
    %581 = vmatprep.subr.mxu0 0.0
    %582 = vmatpush2.msra.mxu0 %v486
    %583 = vmatprep.subr.mxu0 0.0
    %584 = vmatpush2.msra.mxu0 %v485
    %585 = vmatprep.subr.mxu0 0.0
    %586 = vmatpush2.msra.mxu0 %v484
    %587 = vmatprep.subr.mxu0 0.0
    %588 = vmatpush2.msra.mxu0 %v483
    %589 = vmatprep.subr.mxu0 0.0
    %590 = vmatpush2.msra.mxu0 %v482
    %591 = vmatprep.subr.mxu0 0.0
    %592 = vmatpush2.msra.mxu0 %v481
    %593 = vmatprep.mubr.f32.mxu0 %v426
    %594 = vmatmul.mubr.f32.gmra.mxu0 %v425
    %v595 = vpop.f32.mrf.mxu0
    %v596 = vadd.f32 0.0, %v595
    %v597 = vpop.f32.mrf.mxu0
    %598 = vmatprep.mubr.f32.mxu0 %v430
    %599 = vmatmul.mubr.f32.gmra.mxu0 %v429
    %v600 = vpop.f32.mrf.mxu0
    %v601 = vadd.f32 0.0, %v600
    %v602 = vpop.f32.mrf.mxu0
    %603 = vmatprep.mubr.f32.mxu0 %v434
    %604 = vmatmul.mubr.f32.gmra.mxu0 %v433
    %v605 = vpop.f32.mrf.mxu0
    %v606 = vadd.f32 0.0, %v605
    %v607 = vpop.f32.mrf.mxu0
    %608 = vmatprep.mubr.f32.mxu0 %v438
    %609 = vmatmul.mubr.f32.gmra.mxu0 %v437
    %v610 = vpop.f32.mrf.mxu0
    %v611 = vadd.f32 0.0, %v610
    %v612 = vpop.f32.mrf.mxu0
    %613 = vmatprep.mubr.f32.mxu0 %v442
    %614 = vmatmul.mubr.f32.gmra.mxu0 %v441
    %v615 = vpop.f32.mrf.mxu0
    %v616 = vadd.f32 0.0, %v615
    %v617 = vpop.f32.mrf.mxu0
    %618 = vmatprep.mubr.f32.mxu0 %v446
    %619 = vmatmul.mubr.f32.gmra.mxu0 %v445
    %v620 = vpop.f32.mrf.mxu0
    %v621 = vadd.f32 0.0, %v620
    %v622 = vpop.f32.mrf.mxu0
    %623 = vmatprep.mubr.f32.mxu0 %v450
    %624 = vmatmul.mubr.f32.gmra.mxu0 %v449
    %v625 = vpop.f32.mrf.mxu0
    %v626 = vadd.f32 0.0, %v625
    %v627 = vpop.f32.mrf.mxu0
    %628 = vmatprep.mubr.f32.mxu0 %v454
    %629 = vmatmul.mubr.f32.gmra.mxu0 %v453
    %v630 = vpop.f32.mrf.mxu0
    %v631 = vadd.f32 0.0, %v630
    %v632 = vpop.f32.mrf.mxu0
    %633 = vdwg.mxu0
    %634 = vmatprep.subr.mxu0 0.0
    %635 = vmatpush1.msra.mxu0 %v512
    %636 = vmatprep.subr.mxu0 0.0
    %637 = vmatpush1.msra.mxu0 %v511
    %638 = vmatprep.subr.mxu0 0.0
    %639 = vmatpush1.msra.mxu0 %v510
    %640 = vmatprep.subr.mxu0 0.0
    %641 = vmatpush1.msra.mxu0 %v509
    %642 = vmatprep.subr.mxu0 0.0
    %643 = vmatpush1.msra.mxu0 %v508
    %644 = vmatprep.subr.mxu0 0.0
    %645 = vmatpush1.msra.mxu0 %v507
    %646 = vmatprep.subr.mxu0 0.0
    %647 = vmatpush1.msra.mxu0 %v506
    %648 = vmatprep.subr.mxu0 0.0
    %649 = vmatpush1.msra.mxu0 %v505
    %650 = vmatprep.subr.mxu0 0.0
    %651 = vmatpush1.msra.mxu0 %v504
    %652 = vmatprep.subr.mxu0 0.0
    %653 = vmatpush1.msra.mxu0 %v503
    %654 = vmatprep.subr.mxu0 0.0
    %655 = vmatpush1.msra.mxu0 %v502
    %656 = vmatprep.subr.mxu0 0.0
    %657 = vmatpush1.msra.mxu0 %v501
    %658 = vmatprep.subr.mxu0 0.0
    %659 = vmatpush1.msra.mxu0 %v500
    %660 = vmatprep.subr.mxu0 0.0
    %661 = vmatpush1.msra.mxu0 %v499
    %662 = vmatprep.subr.mxu0 0.0
    %663 = vmatpush1.msra.mxu0 %v498
    %664 = vmatprep.subr.mxu0 0.0
    %665 = vmatpush1.msra.mxu0 %v497
    %666 = vmatprep.subr.mxu0 0.0
    %667 = vmatpush2.msra.mxu0 %v528
    %668 = vmatprep.subr.mxu0 0.0
    %669 = vmatpush2.msra.mxu0 %v527
    %670 = vmatprep.subr.mxu0 0.0
    %671 = vmatpush2.msra.mxu0 %v526
    %672 = vmatprep.subr.mxu0 0.0
    %673 = vmatpush2.msra.mxu0 %v525
    %674 = vmatprep.subr.mxu0 0.0
    %675 = vmatpush2.msra.mxu0 %v524
    %676 = vmatprep.subr.mxu0 0.0
    %677 = vmatpush2.msra.mxu0 %v523
    %678 = vmatprep.subr.mxu0 0.0
    %679 = vmatpush2.msra.mxu0 %v522
    %680 = vmatprep.subr.mxu0 0.0
    %681 = vmatpush2.msra.mxu0 %v521
    %682 = vmatprep.subr.mxu0 0.0
    %683 = vmatpush2.msra.mxu0 %v520
    %684 = vmatprep.subr.mxu0 0.0
    %685 = vmatpush2.msra.mxu0 %v519
    %686 = vmatprep.subr.mxu0 0.0
    %687 = vmatpush2.msra.mxu0 %v518
    %688 = vmatprep.subr.mxu0 0.0
    %689 = vmatpush2.msra.mxu0 %v517
    %690 = vmatprep.subr.mxu0 0.0
    %691 = vmatpush2.msra.mxu0 %v516
    %692 = vmatprep.subr.mxu0 0.0
    %693 = vmatpush2.msra.mxu0 %v515
    %694 = vmatprep.subr.mxu0 0.0
    %695 = vmatpush2.msra.mxu0 %v514
    %696 = vmatprep.subr.mxu0 0.0
    %697 = vmatpush2.msra.mxu0 %v513
    %698 = vmatprep.mubr.f32.mxu0 %v428
    %699 = vmatmul.mubr.f32.gmra.mxu0 %v427
    %v700 = vpop.f32.mrf.mxu0
    %v701 = vadd.f32 %v596, %v700
    %v702 = vpop.f32.mrf.mxu0
    %703 = vmatprep.mubr.f32.mxu0 %v432
    %704 = vmatmul.mubr.f32.gmra.mxu0 %v431
    %v705 = vpop.f32.mrf.mxu0
    %v706 = vadd.f32 %v601, %v705
    %v707 = vpop.f32.mrf.mxu0
    %708 = vmatprep.mubr.f32.mxu0 %v436
    %709 = vmatmul.mubr.f32.gmra.mxu0 %v435
    %v710 = vpop.f32.mrf.mxu0
    %v711 = vadd.f32 %v606, %v710
    %v712 = vpop.f32.mrf.mxu0
    %713 = vmatprep.mubr.f32.mxu0 %v440
    %714 = vmatmul.mubr.f32.gmra.mxu0 %v439
    %v715 = vpop.f32.mrf.mxu0
    %v716 = vadd.f32 %v611, %v715
    %v717 = vpop.f32.mrf.mxu0
    %718 = vmatprep.mubr.f32.mxu0 %v444
    %719 = vmatmul.mubr.f32.gmra.mxu0 %v443
    %v720 = vpop.f32.mrf.mxu0
    %v721 = vadd.f32 %v616, %v720
    %v722 = vpop.f32.mrf.mxu0
    %723 = vmatprep.mubr.f32.mxu0 %v448
    %724 = vmatmul.mubr.f32.gmra.mxu0 %v447
    %v725 = vpop.f32.mrf.mxu0
    %v726 = vadd.f32 %v621, %v725
    %v727 = vpop.f32.mrf.mxu0
    %728 = vmatprep.mubr.f32.mxu0 %v452
    %729 = vmatmul.mubr.f32.gmra.mxu0 %v451
    %v730 = vpop.f32.mrf.mxu0
    %v731 = vadd.f32 %v626, %v730
    %v732 = vpop.f32.mrf.mxu0
    %733 = vmatprep.mubr.f32.mxu0 %v456
    %734 = vmatmul.mubr.f32.gmra.mxu0 %v455
    %v735 = vpop.f32.mrf.mxu0
    %v736 = vadd.f32 %v631, %v735
    %v737 = vpop.f32.mrf.mxu0
    %738 = vdwg.mxu0
    %v739 = vadd.f32 %v457, %v701
    %v740 = vadd.f32 %v458, %v706
    %v741 = vadd.f32 %v459, %v711
    %v742 = vadd.f32 %v460, %v716
    %v743 = vadd.f32 %v461, %v721
    %v744 = vadd.f32 %v462, %v726
    %v745 = vadd.f32 %v463, %v731
    %v746 = vadd.f32 %v464, %v736
    %747 = vst [vmem:[#allocation9] sm:$0xff] %v739
    %748 = vst [vmem:[#allocation9 + $0x8] sm:$0xff] %v740
    %749 = vst [vmem:[#allocation9 + $0x10] sm:$0xff] %v741
    %750 = vst [vmem:[#allocation9 + $0x18] sm:$0xff] %v742
    %751 = vst [vmem:[#allocation9 + $0x20] sm:$0xff] %v743
    %752 = vst [vmem:[#allocation9 + $0x28] sm:$0xff] %v744
    %753 = vst [vmem:[#allocation9 + $0x30] sm:$0xff] %v745
    %754 = vst [vmem:[#allocation9 + $0x38] sm:$0xff] %v746
    // Predicated region
    $region38: #{autoencoder_forward.1} parent=1 // pred_check
      %p755 = pneg %p62
    $region39: #{autoencoder_forward.1} parent=1 // pred_check_branch
      %757 = sbr.rel (%p755) target = $region41
    $region40: #{autoencoder_forward.1} parent=1 // pred_region
      %v758 = vld [vmem:[#allocation9] sm:$0xff]
      %v759 = vld [vmem:[#allocation9 + $0x8] sm:$0xff]
      %v760 = vld [vmem:[#allocation9 + $0x10] sm:$0xff]
      %v761 = vld [vmem:[#allocation9 + $0x18] sm:$0xff]
      %v762 = vld [vmem:[#allocation9 + $0x20] sm:$0xff]
      %v763 = vld [vmem:[#allocation9 + $0x28] sm:$0xff]
      %v764 = vld [vmem:[#allocation9 + $0x30] sm:$0xff]
      %v765 = vld [vmem:[#allocation9 + $0x38] sm:$0xff]
      %v766 = vld [vmem:[%s4] sm:$0x1]
      %v768 = vlaneseq
      %v769 = vshrl.u32 %v768, 7
      %v770 = vsub.s32 0, %v769
      %v771 = vrot.slane %v766, %v770
      %v773 = vadd.f32 %v758, %v771
      %v774 = vadd.f32 %v759, %v771
      %v775 = vadd.f32 %v760, %v771
      %v776 = vadd.f32 %v761, %v771
      %v777 = vadd.f32 %v762, %v771
      %v778 = vadd.f32 %v763, %v771
      %v779 = vadd.f32 %v764, %v771
      %v780 = vadd.f32 %v765, %v771
      %781 = vst [vmem:[#allocation9] sm:$0xff] %v773
      %782 = vst [vmem:[#allocation9 + $0x8] sm:$0xff] %v774
      %783 = vst [vmem:[#allocation9 + $0x10] sm:$0xff] %v775
      %784 = vst [vmem:[#allocation9 + $0x18] sm:$0xff] %v776
      %785 = vst [vmem:[#allocation9 + $0x20] sm:$0xff] %v777
      %786 = vst [vmem:[#allocation9 + $0x28] sm:$0xff] %v778
      %787 = vst [vmem:[#allocation9 + $0x30] sm:$0xff] %v779
      %788 = vst [vmem:[#allocation9 + $0x38] sm:$0xff] %v780
    $region41: #{autoencoder_forward.1} parent=1 // pred_fallthru
      _
    // Predicated region
    $region42: #{autoencoder_forward.1} parent=1 // pred_check
      _
    $region43: #{autoencoder_forward.1} parent=1 // pred_check_branch
      %790 = sbr.rel (0) target = $region45
    $region44: #{autoencoder_forward.1} parent=1 // pred_region
      %s792 = ssub.s32 1024, 1024
      %793 = vsyncadd [#allocation5], %s792
      %s794 = sshll.u32 [#allocation9], 4
      %s795 = int_to_ptr.vmem [resolvable:$true] %s794
      %800 = dma.vmem_to_hbm [thread:$0]  %s795, 1024, %s5, [#allocation5], 128, 128, 8
    $region45: #{autoencoder_forward.1} parent=1 // pred_fallthru
      _
    // Predicated region
    $region46: #{autoencoder_forward.1} parent=1 // pred_check
      _
    $region47: #{autoencoder_forward.1} parent=1 // pred_check_branch
      %802 = sbr.rel (0) target = $region49
    $region48: #{autoencoder_forward.1} parent=1 // pred_region
      %803 = dma.done [#allocation5], 1024
    $region49: #{autoencoder_forward.1} parent=1 // pred_fallthru
      _
    %804 = vsyncpa [#allocation4], 1
    %805 = vsyncpa [#allocation7], 1
    %806 = vsyncpa [#allocation5], 1

</llo_original>
